<compile_context>
chip_gen: v6e
topology: v6e:2x2x1
jax: 0.10.0
libtpu: 0.0.40
codegen_flags: <defaults>
</compile_context>

<pallas_src>
import jax
import jax.numpy as jnp
import numpy as np
from jax.experimental import pallas as pl
from jax.experimental.pallas import tpu as pltpu

_MASK_NEG = -1e30  # stands in for float('-inf'); identical softmax for non-fully-masked rows


# --------------------------------------------------------------------------------------
# helpers
# --------------------------------------------------------------------------------------
def _act(name):
    if name == 'relu':
        return jax.nn.relu
    if name == 'gelu':
        return lambda x: jax.nn.gelu(x, approximate=False)
    # TODO(synk): 'glu' changes the feature width; not supported in this kernel.
    raise NotImplementedError(f"activation {name!r} not supported")


def _layer_norm(x, ln, eps=1e-5):
    # ln: (2, D) -> row 0 = weight, row 1 = bias   (torch LayerNorm, eps=1e-5)
    w = ln[0:1, :]
    b = ln[1:2, :]
    mu = jnp.mean(x, axis=-1, keepdims=True)
    xc = x - mu
    var = jnp.mean(xc * xc, axis=-1, keepdims=True)
    return xc * jax.lax.rsqrt(var + eps) * w + b


# --------------------------------------------------------------------------------------
# kernel 1: per-batch instance-norm statistics (mean / unbiased std over the sequence)
# --------------------------------------------------------------------------------------
def _instance_stats_kernel(fd_ref, fs_ref, out_ref):
    fd = fd_ref[0]                       # (S, D)
    fs = fs_ref[0]
    n = fd.shape[0]
    du = jnp.mean(fd, axis=0, keepdims=True)
    su = jnp.mean(fs, axis=0, keepdims=True)
    ds = jnp.sqrt(jnp.sum((fd - du) ** 2, axis=0, keepdims=True) / (n - 1))   # torch .std() ddof=1
    ss = jnp.sqrt(jnp.sum((fs - su) ** 2, axis=0, keepdims=True) / (n - 1))
    out_ref[0] = jnp.concatenate([du, ds, su, ss], axis=0)                    # (4, D)


# --------------------------------------------------------------------------------------
# kernel 2: the fused encoder layer for one batch element
# --------------------------------------------------------------------------------------
def _make_layer_kernel(*, nhead, fuse, layer_norm, activation, mm_dtype):
    act = _act(activation)
    f32 = jnp.float32

    def kernel(*refs):
        it = iter(refs)
        fd_ref, fs_ref, pd_ref, ps_ref = next(it), next(it), next(it), next(it)
        scale_ref, shiftk_ref, res_sh_ref = next(it), next(it), next(it)
        abias_ref, kbias_ref = next(it), next(it)
        if fuse == 'linear':
            wf12_ref, bf12_ref, wf3_ref, bf3_ref = next(it), next(it), next(it), next(it)
        wqkv_ref, bqkv_ref, wo_ref, bo_ref = next(it), next(it), next(it), next(it)
        w1_ref, b1_ref, w2_ref, b2_ref = next(it), next(it), next(it), next(it)
        ln1_ref, ln2_ref = next(it), next(it)
        out_ref = next(it)

        fd = fd_ref[0]                   # (S, D) feat_deep
        fs = fs_ref[0]                   # (S, D) feat_shallow
        pd = pd_ref[0]                   # (S, D) pos_deep
        ps = ps_ref[0]                   # (S, D) pos_shallow
        S, D = fd.shape
        hd = D // nhead

        def mm(x, w):
            return jnp.dot(x.astype(mm_dtype), w.astype(mm_dtype),
                           preferred_element_type=f32)

        # ---- cross-resolution fuse ----------------------------------------------------
        if fuse == 'linear':
            wf12 = wf12_ref[...]                                    # (D, 2D)
            bf12 = bf12_ref[...]                                    # (1, 2D)
            a = act(mm(fd, wf12[:, :D]) + bf12[:, :D])
            b = act(mm(fs, wf12[:, D:]) + bf12[:, D:])
            f_deep = mm(a + b, wf3_ref[...]) + bf3_ref[...]
        elif fuse == 'simple':
            f_deep = fd + fs
        else:                                                       # fuse is None
            f_deep = fd

        # ---- instance norm + gamma/beta folded into a per-(b,d) scale/shift,
        #      plus positional encodings / resolution embeddings ------------------------
        kp = f_deep * scale_ref[0] + shiftk_ref[0] + pd             # shift includes res_embed
        qp = fs + ps + res_sh_ref[...]

        # ---- QKV projections (lane-dense along d_model, K = d_model) -------------------
        wqkv = wqkv_ref[...]                                        # (D, 3D)
        bqkv = bqkv_ref[...]                                        # (1, 3D)
        q = mm(qp, wqkv[:, 0 * D:1 * D]) + bqkv[:, 0 * D:1 * D]
        k = mm(kp, wqkv[:, 1 * D:2 * D]) + bqkv[:, 1 * D:2 * D]
        v = mm(fs, wqkv[:, 2 * D:3 * D]) + bqkv[:, 2 * D:3 * D]
        q = q * (hd ** -0.5)

        bias = abias_ref[0] + kbias_ref[0]                          # (S, S) additive mask bias

        # ---- multi-head attention.  Per-head QK^T / PV (fixed small trip count,
        #      fully unrolled), then the head outputs are concatenated back to
        #      (S, D) so the out-projection is ONE K=D MXU matmul. --------------------
        head_outs = []
        for h in range(nhead):
            sl = slice(h * hd, (h + 1) * hd)
            qh, kh, vh = q[:, sl], k[:, sl], v[:, sl]
            logits = jax.lax.dot_general(
                qh.astype(mm_dtype), kh.astype(mm_dtype),
                (((1,), (1,)), ((), ())), preferred_element_type=f32) + bias
            logits = logits - jnp.max(logits, axis=-1, keepdims=True)
            e = jnp.exp(logits)
            inv_l = pl.reciprocal(jnp.sum(e, axis=-1, keepdims=True), approx=True)
            p = e * inv_l
            head_outs.append(mm(p, vh))                             # (S, hd)
        attn_cat = jnp.concatenate(head_outs, axis=1)               # (S, D) lane-dense
        attn_out = mm(attn_cat, wo_ref[...]) + bo_ref[...]          # single out-proj

        # ---- residual + norm1 + FFN + residual + norm2 (dropout = identity) ------------
        x = fs + attn_out
        if layer_norm:
            x = _layer_norm(x, ln1_ref[...])
        h1 = act(mm(x, w1_ref[...]) + b1_ref[...])
        y = mm(h1, w2_ref[...]) + b2_ref[...]
        x = x + y
        if layer_norm:
            x = _layer_norm(x, ln2_ref[...])
        out_ref[0] = x.astype(out_ref.dtype)

    return kernel


# --------------------------------------------------------------------------------------
# public wrapper
# --------------------------------------------------------------------------------------
def cross_resolution_encoder_layer_forward(
        params, feat_deep, feat_shallow, mask_deep, mask_shallow, pos_deep, pos_shallow, *,
        nhead, fuse='linear', layer_norm=True, custom_instance_norm=True,
        activation='relu', mm_dtype=jnp.float32):
    """Pallas forward of CrossResolutionEncoderLayer.  Inputs are torch-style
    (S, B, D) sequence-first; masks are (B, S) bool.  dropout is treated as 0."""
    if fuse not in (None, 'simple', 'linear'):
        # TODO(synk): fuse='bilinear' (nn.Bilinear) not implemented as a Pallas kernel.
        raise NotImplementedError(f"fuse={fuse!r} not supported")
    f32 = jnp.float32
    S, B, D = feat_deep.shape
    assert feat_shallow.shape == (S, B, D)       # required by the module's MHA call
    assert D % nhead == 0
    F_ff = params['w1'].shape[0]

    # layout glue: batch-major (B, S, D), d_model on the lane axis
    fd_b = jnp.transpose(feat_deep, (1, 0, 2)).astype(f32)
    fs_b = jnp.transpose(feat_shallow, (1, 0, 2)).astype(f32)
    pd_b = jnp.transpose(pos_deep, (1, 0, 2)).astype(f32)
    ps_b = jnp.transpose(pos_shallow, (1, 0, 2)).astype(f32)

    gamma = params['gamma'].reshape(1, D).astype(f32)
    beta = params['beta'].reshape(1, D).astype(f32)
    res_embed = params['res_embed'].reshape(1, D).astype(f32)
    res_embed_sh = params['res_embed_shallow'].reshape(1, D).astype(f32)

    parallel = pltpu.CompilerParams(dimension_semantics=("parallel",))

    # ---- instance-norm statistics (Pallas reduction over the sequence axis) ----------
    if custom_instance_norm:
        stats = pl.pallas_call(
            _instance_stats_kernel,
            out_shape=jax.ShapeDtypeStruct((B, 4, D), f32),
            grid=(B,),
            in_specs=[pl.BlockSpec((1, S, D), lambda b: (b, 0, 0)),
                      pl.BlockSpec((1, S, D), lambda b: (b, 0, 0))],
            out_specs=pl.BlockSpec((1, 4, D), lambda b: (b, 0, 0)),
            compiler_params=parallel,
        )(fd_b, fs_b)
        deep_u, deep_s = stats[:, 0, :], stats[:, 1, :]
        shallow_u, shallow_s = stats[:, 2, :], stats[:, 3, :]
        # torch gates the division on the GLOBAL (all batches/channels) min of deep_s
        divide_ok = jnp.min(deep_s) > 1e-10
        deep_scale = jnp.where(divide_ok, 1.0 / deep_s, jnp.ones_like(deep_s))
        # ((x - du)*deep_scale)*ss + su, then *gamma + beta  ==  x*scale + shift
        scale_bd = deep_scale * shallow_s * gamma
        shift_bd = (shallow_u - deep_u * deep_scale * shallow_s) * gamma + beta
    else:
        scale_bd = jnp.broadcast_to(gamma, (B, D))
        shift_bd = jnp.broadcast_to(beta, (B, D))
    shift_k_bd = shift_bd + res_embed            # fold res_embed into the key-side shift

    # ---- masks -> additive biases (tiny (S,S)/(B,S) glue, mirrors torch.mm(...).bool())
    attn_mask = jnp.dot(mask_shallow.astype(f32).T, mask_deep.astype(f32)) != 0
    attn_bias = jnp.where(attn_mask, _MASK_NEG, 0.0).astype(f32).reshape(1, S, S)
    kpad_bias = jnp.where(mask_shallow, _MASK_NEG, 0.0).astype(f32).reshape(B, 1, S)

    # ---- weights pre-transposed to (in, out) so matmul outputs are lane-dense ---------
    wqkv_t = jnp.concatenate([params['wq'].T, params['wk'].T, params['wv'].T],
                             axis=1).astype(mm_dtype)                       # (D, 3D)
    bqkv = jnp.concatenate([params['bq'], params['bk'], params['bv']]).reshape(1, 3 * D).astype(f32)
    wo_t = params['wo'].T.astype(mm_dtype)
    bo = params['bo'].reshape(1, D).astype(f32)
    w1_t = params['w1'].T.astype(mm_dtype)
    b1 = params['b1'].reshape(1, F_ff).astype(f32)
    w2_t = params['w2'].T.astype(mm_dtype)
    b2 = params['b2'].reshape(1, D).astype(f32)
    ln1 = (jnp.stack([params['ln1_w'], params['ln1_b']]).astype(f32)
           if layer_norm else jnp.zeros((2, D), f32))
    ln2 = (jnp.stack([params['ln2_w'], params['ln2_b']]).astype(f32)
           if layer_norm else jnp.zeros((2, D), f32))

    def per_batch(shape):
        nd = len(shape)
        return pl.BlockSpec((1,) + tuple(shape[1:]), lambda b: (b,) + (0,) * (nd - 1))

    def shared(shape):
        nd = len(shape)
        return pl.BlockSpec(tuple(shape), lambda b: (0,) * nd)

    args = [fd_b, fs_b, pd_b, ps_b,
            scale_bd.reshape(B, 1, D), shift_k_bd.reshape(B, 1, D), res_embed_sh,
            attn_bias, kpad_bias]
    specs = ([per_batch(a.shape) for a in args[:6]]
             + [shared(res_embed_sh.shape), shared(attn_bias.shape), per_batch(kpad_bias.shape)])

    if fuse == 'linear':
        wf12_t = jnp.concatenate([params['fuse_w1'].T, params['fuse_w2'].T],
                                 axis=1).astype(mm_dtype)                   # (D, 2D)
        bf12 = jnp.concatenate([params['fuse_b1'], params['fuse_b2']]).reshape(1, 2 * D).astype(f32)
        wf3_t = params['fuse_w3'].T.astype(mm_dtype)
        bf3 = params['fuse_b3'].reshape(1, D).astype(f32)
        fuse_args = [wf12_t, bf12, wf3_t, bf3]
        args += fuse_args
        specs += [shared(a.shape) for a in fuse_args]

    tail = [wqkv_t, bqkv, wo_t, bo, w1_t, b1, w2_t, b2, ln1, ln2]
    args += tail
    specs += [shared(a.shape) for a in tail]

    kernel = _make_layer_kernel(nhead=nhead, fuse=fuse, layer_norm=layer_norm,
                                activation=activation, mm_dtype=mm_dtype)
    out_b = pl.pallas_call(
        kernel,
        out_shape=jax.ShapeDtypeStruct((B, S, D), f32),
        grid=(B,),
        in_specs=specs,
        out_specs=pl.BlockSpec((1, S, D), lambda b: (b, 0, 0)),
        compiler_params=parallel,
    )(*args)
    return jnp.transpose(out_b, (1, 0, 2))       # back to torch's (S, B, D)


# --------------------------------------------------------------------------------------
# pure-JAX reference (mirrors the torch forward, dropout = 0)
# --------------------------------------------------------------------------------------
def _ln_ref(x, w, b, eps=1e-5):
    mu = x.mean(axis=-1, keepdims=True)
    var = ((x - mu) ** 2).mean(axis=-1, keepdims=True)
    return (x - mu) / jnp.sqrt(var + eps) * w + b


def cross_resolution_encoder_layer_reference(
        params, feat_deep, feat_shallow, mask_deep, mask_shallow, pos_deep, pos_shallow, *,
        nhead, fuse='linear', layer_norm=True, custom_instance_norm=True, activation='relu'):
    act = _act(activation)
    hp = jax.lax.Precision.HIGHEST
    S, B, D = feat_deep.shape
    hd = D // nhead

    if fuse is None:
        f = feat_deep
    elif fuse == 'simple':
        f = feat_deep + feat_shallow
    elif fuse == 'linear':
        a = act(jnp.einsum('sbd,ed->sbe', feat_deep, params['fuse_w1'], precision=hp) + params['fuse_b1'])
        b = act(jnp.einsum('sbd,ed->sbe', feat_shallow, params['fuse_w2'], precision=hp) + params['fuse_b2'])
        f = jnp.einsum('sbd,ed->sbe', a + b, params['fuse_w3'], precision=hp) + params['fuse_b3']
    else:
        raise NotImplementedError(fuse)

    if custom_instance_norm:
        du = feat_deep.mean(axis=0)
        ds = feat_deep.std(axis=0, ddof=1)
        su = feat_shallow.mean(axis=0)
        ss = feat_shallow.std(axis=0, ddof=1)
        f = f - du
        f = jnp.where(jnp.min(ds) > 1e-10, f / ds, f)
        f = f * ss + su
    f = f * params['gamma'] + params['beta']

    kp = f + pos_deep + params['res_embed'][None]
    qp = feat_shallow + pos_shallow + params['res_embed_shallow'][None]
    vv = feat_shallow

    attn_mask = jnp.dot(mask_shallow.astype(jnp.float32).T, mask_deep.astype(jnp.float32),
                        precision=hp) != 0
    q = jnp.einsum('sbd,ed->sbe', qp, params['wq'], precision=hp) + params['bq']
    k = jnp.einsum('sbd,ed->sbe', kp, params['wk'], precision=hp) + params['bk']
    v = jnp.einsum('sbd,ed->sbe', vv, params['wv'], precision=hp) + params['bv']

    def heads(x):
        return x.reshape(S, B, nhead, hd).transpose(1, 2, 0, 3)     # (B, H, S, hd)

    qh, kh, vh = heads(q) * (hd ** -0.5), heads(k), heads(v)
    logits = jnp.einsum('bhqe,bhke->bhqk', qh, kh, precision=hp)
    bias = jnp.where(attn_mask, _MASK_NEG, 0.0)[None, None]
    bias = bias + jnp.where(mask_shallow, _MASK_NEG, 0.0)[:, None, None, :]
    p = jax.nn.softmax(logits + bias, axis=-1)
    o = jnp.einsum('bhqk,bhke->bhqe', p, vh, precision=hp)
    o = o.transpose(2, 0, 1, 3).reshape(S, B, D)
    o = jnp.einsum('sbd,ed->sbe', o, params['wo'], precision=hp) + params['bo']

    x = feat_shallow + o
    if layer_norm:
        x = _ln_ref(x, params['ln1_w'], params['ln1_b'])
    y = act(jnp.einsum('sbd,fd->sbf', x, params['w1'], precision=hp) + params['b1'])
    y = jnp.einsum('sbf,df->sbd', y, params['w2'], precision=hp) + params['b2']
    x = x + y
    if layer_norm:
        x = _ln_ref(x, params['ln2_w'], params['ln2_b'])
    return x


# --------------------------------------------------------------------------------------
if __name__ == "__main__":
    # small, TPU-lane-friendly config: d_model=128, nhead=4, dim_feedforward=256
    S, B, D, H, F_ff = 16, 2, 128, 4, 256

    key = jax.random.PRNGKey(0)
    keys = jax.random.split(key, 24)

    def w(k, shape, scale=0.05):
        return (scale * jax.random.normal(k, shape)).astype(jnp.float32)

    params = {
        'fuse_w1': w(keys[0], (D, D)), 'fuse_b1': w(keys[1], (D,)),
        'fuse_w2': w(keys[2], (D, D)), 'fuse_b2': w(keys[3], (D,)),
        'fuse_w3': w(keys[4], (D, D)), 'fuse_b3': w(keys[5], (D,)),
        'wq': w(keys[6], (D, D)), 'bq': w(keys[7], (D,)),
        'wk': w(keys[8], (D, D)), 'bk': w(keys[9], (D,)),
        'wv': w(keys[10], (D, D)), 'bv': w(keys[11], (D,)),
        'wo': w(keys[12], (D, D)), 'bo': w(keys[13], (D,)),
        'w1': w(keys[14], (F_ff, D)), 'b1': w(keys[15], (F_ff,)),
        'w2': w(keys[16], (D, F_ff)), 'b2': w(keys[17], (D,)),
        'ln1_w': jnp.ones((D,), jnp.float32), 'ln1_b': jnp.zeros((D,), jnp.float32),
        'ln2_w': jnp.ones((D,), jnp.float32), 'ln2_b': jnp.zeros((D,), jnp.float32),
        'gamma': jnp.ones((D,), jnp.float32), 'beta': jnp.zeros((D,), jnp.float32),
        'res_embed': w(keys[18], (1, D)), 'res_embed_shallow': w(keys[19], (1, D)),
    }

    feat_deep = jax.random.normal(keys[20], (S, B, D), jnp.float32)
    feat_shallow = jax.random.normal(keys[21], (S, B, D), jnp.float32)
    pos_deep = 0.1 * jax.random.normal(keys[22], (S, B, D), jnp.float32)
    pos_shallow = 0.1 * jax.random.normal(keys[23], (S, B, D), jnp.float32)
    # bool padding masks (B, S); chosen so no query row is fully masked
    mask_deep = jnp.zeros((B, S), jnp.bool_).at[0, 3].set(True)
    mask_shallow = jnp.zeros((B, S), jnp.bool_).at[0, 2].set(True).at[1, 5].set(True)

    cfg = dict(nhead=H, fuse='linear', layer_norm=True, custom_instance_norm=True,
               activation='relu')

    # f32 path (tolerance covers MXU f32 matmul pass differences vs the XLA reference)
    out = cross_resolution_encoder_layer_forward(
        params, feat_deep, feat_shallow, mask_deep, mask_shallow, pos_deep, pos_shallow, **cfg)
    out = jax.block_until_ready(out)
    ref = cross_resolution_encoder_layer_reference(
        params, feat_deep, feat_shallow, mask_deep, mask_shallow, pos_deep, pos_shallow, **cfg)
    np.testing.assert_allclose(np.asarray(out), np.asarray(ref), rtol=2e-2, atol=2e-2)

    # also exercise the 'simple' fuse / no-instance-norm static paths
    cfg2 = dict(nhead=H, fuse='simple', layer_norm=True, custom_instance_norm=False,
                activation='relu')
    out2 = cross_resolution_encoder_layer_forward(
        params, feat_deep, feat_shallow, mask_deep, mask_shallow, pos_deep, pos_shallow, **cfg2)
    out2 = jax.block_until_ready(out2)
    ref2 = cross_resolution_encoder_layer_reference(
        params, feat_deep, feat_shallow, mask_deep, mask_shallow, pos_deep, pos_shallow, **cfg2)
    np.testing.assert_allclose(np.asarray(out2), np.asarray(ref2), rtol=2e-2, atol=2e-2)

    # bf16-MXU-input variant (perf option for v6e/v5e): f32 accumulation,
    # checked loosely against the f32 reference.
    out_bf16 = cross_resolution_encoder_layer_forward(
        params, feat_deep, feat_shallow, mask_deep, mask_shallow, pos_deep, pos_shallow,
        mm_dtype=jnp.bfloat16, **cfg)
    out_bf16 = jax.block_until_ready(out_bf16)
    np.testing.assert_allclose(np.asarray(out_bf16), np.asarray(ref), rtol=1e-1, atol=1e-1)

    print("KERNEL_OK")
</pallas_src>

<mosaic_0001>
module attributes {stable_mosaic.version = 11 : i64} {
  func.func @_instance_stats_kernel(%arg0: i32, %arg1: memref<1x16x128xf32, #tpu.memory_space<vmem>>, %arg2: memref<1x16x128xf32, #tpu.memory_space<vmem>>, %arg3: memref<1x4x128xf32, #tpu.memory_space<vmem>>) attributes {dimension_semantics = [#tpu.dimension_semantics<parallel>], iteration_bounds = array<i64: 2>, scalar_prefetch = 0 : i64, scratch_operands = 0 : i64, tpu.core_type = #tpu.core_type<tc>, window_params = [{transform_indices = @transform_0, window_bounds = array<i64: 1, 16, 128>}, {transform_indices = @transform_1, window_bounds = array<i64: 1, 16, 128>}, {transform_indices = @transform_2, window_bounds = array<i64: 1, 4, 128>}]} {
    %c0 = arith.constant 0 : index
    %c0_0 = arith.constant 0 : index
    %c0_1 = arith.constant 0 : index
    %0 = vector.load %arg1[%c0, %c0_0, %c0_1] : memref<1x16x128xf32, #tpu.memory_space<vmem>>, vector<1x16x128xf32>
    %1 = vector.shape_cast %0 : vector<1x16x128xf32> to vector<16x128xf32>
    %c0_2 = arith.constant 0 : index
    %c0_3 = arith.constant 0 : index
    %c0_4 = arith.constant 0 : index
    %2 = vector.load %arg2[%c0_2, %c0_3, %c0_4] : memref<1x16x128xf32, #tpu.memory_space<vmem>>, vector<1x16x128xf32>
    %3 = vector.shape_cast %2 : vector<1x16x128xf32> to vector<16x128xf32>
    %cst = arith.constant dense<0.000000e+00> : vector<128xf32>
    %4 = vector.multi_reduction <add>, %1, %cst [0] : vector<16x128xf32> to vector<128xf32>
    %5 = vector.shape_cast %4 : vector<128xf32> to vector<1x128xf32>
    %cst_5 = arith.constant 1.600000e+01 : f32
    %6 = vector.broadcast %cst_5 : f32 to vector<1x128xf32>
    %7 = arith.divf %5, %6 : vector<1x128xf32>
    %cst_6 = arith.constant dense<0.000000e+00> : vector<128xf32>
    %8 = vector.multi_reduction <add>, %3, %cst_6 [0] : vector<16x128xf32> to vector<128xf32>
    %9 = vector.shape_cast %8 : vector<128xf32> to vector<1x128xf32>
    %cst_7 = arith.constant 1.600000e+01 : f32
    %10 = vector.broadcast %cst_7 : f32 to vector<1x128xf32>
    %11 = arith.divf %9, %10 : vector<1x128xf32>
    %12 = vector.broadcast %7 : vector<1x128xf32> to vector<16x128xf32>
    %13 = arith.subf %1, %12 : vector<16x128xf32>
    %14 = arith.mulf %13, %13 : vector<16x128xf32>
    %cst_8 = arith.constant dense<0.000000e+00> : vector<128xf32>
    %15 = vector.multi_reduction <add>, %14, %cst_8 [0] : vector<16x128xf32> to vector<128xf32>
    %16 = vector.shape_cast %15 : vector<128xf32> to vector<1x128xf32>
    %cst_9 = arith.constant 1.500000e+01 : f32
    %17 = vector.broadcast %cst_9 : f32 to vector<1x128xf32>
    %18 = arith.divf %16, %17 : vector<1x128xf32>
    %19 = math.sqrt %18 : vector<1x128xf32>
    %20 = vector.broadcast %11 : vector<1x128xf32> to vector<16x128xf32>
    %21 = arith.subf %3, %20 : vector<16x128xf32>
    %22 = arith.mulf %21, %21 : vector<16x128xf32>
    %cst_10 = arith.constant dense<0.000000e+00> : vector<128xf32>
    %23 = vector.multi_reduction <add>, %22, %cst_10 [0] : vector<16x128xf32> to vector<128xf32>
    %24 = vector.shape_cast %23 : vector<128xf32> to vector<1x128xf32>
    %cst_11 = arith.constant 1.500000e+01 : f32
    %25 = vector.broadcast %cst_11 : f32 to vector<1x128xf32>
    %26 = arith.divf %24, %25 : vector<1x128xf32>
    %27 = math.sqrt %26 : vector<1x128xf32>
    %28 = tpu.concatenate %7, %19, %11, %27 in 0 : vector<1x128xf32>, vector<1x128xf32>, vector<1x128xf32>, vector<1x128xf32> -> vector<4x128xf32>
    %c0_12 = arith.constant 0 : index
    %c0_13 = arith.constant 0 : index
    %c0_14 = arith.constant 0 : index
    %29 = vector.load %arg3[%c0_12, %c0_13, %c0_14] : memref<1x4x128xf32, #tpu.memory_space<vmem>>, vector<1x4x128xf32>
    %30 = vector.shape_cast %29 : vector<1x4x128xf32> to vector<4x128xf32>
    %31 = vector.shape_cast %28 : vector<4x128xf32> to vector<1x4x128xf32>
    tpu.vector_store %arg3[%c0_12, %c0_13, %c0_14], %31 {strides = array<i32>} : memref<1x4x128xf32, #tpu.memory_space<vmem>>, vector<1x4x128xf32>,
    return
  }
  func.func @transform_0(%arg0: i32) -> (i32, i32, i32) {
    %c0_i32 = arith.constant 0 : i32
    %c0_i32_0 = arith.constant 0 : i32
    %c0_i32_1 = arith.constant 0 : i32
    return %arg0, %c0_i32, %c0_i32_0 : i32, i32, i32
  }
  func.func @transform_1(%arg0: i32) -> (i32, i32, i32) {
    %c0_i32 = arith.constant 0 : i32
    %c0_i32_0 = arith.constant 0 : i32
    %c0_i32_1 = arith.constant 0 : i32
    return %arg0, %c0_i32, %c0_i32_0 : i32, i32, i32
  }
  func.func @transform_2(%arg0: i32) -> (i32, i32, i32) {
    %c0_i32 = arith.constant 0 : i32
    %c0_i32_0 = arith.constant 0 : i32
    %c0_i32_1 = arith.constant 0 : i32
    return %arg0, %c0_i32, %c0_i32_0 : i32, i32, i32
  }
}

</mosaic_0001>

<llo_original>
// kernel: tpu_custom_call.1
$region0: #{tpu_custom_call.1}
  #allocation0 [shape = 'u32[]', space=smem, size = 0x4, offset = 0x4, fixed_abs, tag = 'smem constant byte address 0x4 - core index']
  #allocation1 [shape = 'u32[144,128]{1,0:T(1,128)}', space=vmem, size = 0x12000, scoped, tag = 'internal scratch']
  %s0 = inlined_call_operand.hbm [shape: f32[2,16,128], index: 0, kind: input, shape index: {}]
  %s1 = inlined_call_operand.hbm [shape: f32[2,16,128], index: 1, kind: input, shape index: {}]
  %s2 = inlined_call_operand.hbm [shape: f32[2,4,128], index: 2, kind: output, shape index: {}]
  %s3 = sld [smem:[#allocation0]]
  $region49: #{tpu_custom_call.1} parent=0
    _
  %s5 = ssub.s32 1, %s3
  %s6 = scalar_select 0, %s5, %s3
  $region1: #{tpu_custom_call.1} parent=0
    #allocation2 [shape = 'u8[16384]{0}', space=vmem, size = 0x4000, scoped, tag = 'input window, operand 0']
    #allocation3 [shape = 's32[2]{0}', space=sflag, size = 0x8, scoped, tag = 'scoped memory for tpu_custom_call.1']
    #allocation4 [shape = 's32[2]{0}', space=sflag, size = 0x8, scoped, tag = 'scoped memory for tpu_custom_call.1']
    #allocation5 [shape = 'u8[16384]{0}', space=vmem, size = 0x4000, scoped, tag = 'input window, operand 1']
    #allocation6 [shape = 's32[2]{0}', space=sflag, size = 0x8, scoped, tag = 'scoped memory for tpu_custom_call.1']
    #allocation7 [shape = 'u8[4096]{0}', space=vmem, size = 0x1000, scoped, tag = 'output window, operand 0']
    %7 = vsyncpa [#allocation3], 0
    %s8 = scalar_lea.sflag [#allocation3], 1
    %9 = vsyncpa %s8, 0
    %10 = vsyncpa [#allocation6], 0
    %s11 = scalar_lea.sflag [#allocation6], 1
    %12 = vsyncpa %s11, 0
    %13 = vsyncpa [#allocation4], 0
    %s14 = scalar_lea.sflag [#allocation4], 1
    %15 = vsyncpa %s14, 0
    loop: start=0, step=1, limit=4
    $region2: #{tpu_custom_call.1} parent=1 // loop_pre_header
      _
    $region3: #{tpu_custom_call.1} parent=1 // loop_header
      %s17 = sphi 0, %s21
      %p18 = scmp.ge.s32.totalorder %s17, 4
      %s27 = sphi 0, %s29
      %s30 = sphi 0, %s27
      %s31 = sphi 0, %s30
      %s47 = sphi 0, %s31
      %s53 = sphi 0, %s55
      %s56 = sphi 0, %s53
      %s57 = sphi 0, %s56
      %s73 = sphi 0, %s57
      %s79 = sphi 0, %s81
      %s82 = sphi 0, %s79
      %s83 = sphi 0, %s82
      %s99 = sphi 0, %s83
    $region4: #{tpu_custom_call.1} parent=1 // loop_header_branch
      %20 = sbr.rel (%p18) target = $region8
    $region5: #{tpu_custom_call.1} parent=1 // loop_body
      %s22 = ssub.s32 %s17, 1
      %s23 = ssub.s32 %s17, 2
      %s24 = sadd.s32 %s17, 1
      %s25 = ssub.s32 %s17, %s24
      %p26 = scmp.eq.s32.totalorder %s25, 0
      %s28 = sadd.s32 %s27, 1
      %s29 = scalar_select %p26, %s27, %s28
      %p32 = pneg %p26
      %p33 = scmp.eq.s32.totalorder %s17, 1
      %p34 = por %p32, %p33
      %p35 = scmp.ne.s32.totalorder %s27, %s30
      %p36 = scmp.eq.s32.totalorder %s17, 0
      %p37 = por %p35, %p36
      %p38 = scmp.ne.s32.totalorder %s27, %s30
      %p39 = scmp.eq.s32.totalorder %s22, 1
      %p40 = por %p38, %p39
      %p41 = scmp.ne.s32.totalorder %s30, %s31
      %p42 = scmp.eq.s32.totalorder %s22, 0
      %p43 = por %p41, %p42
      %p44 = scmp.ne.s32.totalorder %s30, %s31
      %p45 = scmp.eq.s32.totalorder %s23, 1
      %p46 = por %p44, %p45
      %p48 = scmp.ne.s32.totalorder %s31, %s47
      %p49 = scmp.eq.s32.totalorder %s23, 0
      %p50 = por %p48, %p49
      %s51 = ssub.s32 %s17, %s24
      %p52 = scmp.eq.s32.totalorder %s51, 0
      %s54 = sadd.s32 %s53, 1
      %s55 = scalar_select %p52, %s53, %s54
      %p58 = pneg %p52
      %p59 = scmp.eq.s32.totalorder %s17, 1
      %p60 = por %p58, %p59
      %p61 = scmp.ne.s32.totalorder %s53, %s56
      %p62 = scmp.eq.s32.totalorder %s17, 0
      %p63 = por %p61, %p62
      %p64 = scmp.ne.s32.totalorder %s53, %s56
      %p65 = scmp.eq.s32.totalorder %s22, 1
      %p66 = por %p64, %p65
      %p67 = scmp.ne.s32.totalorder %s56, %s57
      %p68 = scmp.eq.s32.totalorder %s22, 0
      %p69 = por %p67, %p68
      %p70 = scmp.ne.s32.totalorder %s56, %s57
      %p71 = scmp.eq.s32.totalorder %s23, 1
      %p72 = por %p70, %p71
      %p74 = scmp.ne.s32.totalorder %s57, %s73
      %p75 = scmp.eq.s32.totalorder %s23, 0
      %p76 = por %p74, %p75
      %s77 = ssub.s32 %s17, %s24
      %p78 = scmp.eq.s32.totalorder %s77, 0
      %s80 = sadd.s32 %s79, 1
      %s81 = scalar_select %p78, %s79, %s80
      %p84 = pneg %p78
      %p85 = scmp.eq.s32.totalorder %s17, 1
      %p86 = por %p84, %p85
      %p87 = scmp.ne.s32.totalorder %s79, %s82
      %p88 = scmp.eq.s32.totalorder %s17, 0
      %p89 = por %p87, %p88
      %p90 = scmp.ne.s32.totalorder %s79, %s82
      %p91 = scmp.eq.s32.totalorder %s22, 1
      %p92 = por %p90, %p91
      %p93 = scmp.ne.s32.totalorder %s82, %s83
      %p94 = scmp.eq.s32.totalorder %s22, 0
      %p95 = por %p93, %p94
      %p96 = scmp.ne.s32.totalorder %s82, %s83
      %p97 = scmp.eq.s32.totalorder %s23, 1
      %p98 = por %p96, %p97
      %p100 = scmp.ne.s32.totalorder %s83, %s99
      %p101 = scmp.eq.s32.totalorder %s23, 0
      %p102 = por %p100, %p101
      %p103 = scmp.le.s32.totalorder 1, %s17
      %p104 = scmp.lt.s32.totalorder %s17, 3
      %p105 = pnand %p103, %p104
      %p106 = pneg %p105
      // Predicated region
      $region9: #{tpu_custom_call.1} parent=5 // pred_check
        _
      $region10: #{tpu_custom_call.1} parent=5 // pred_check_branch
        %108 = sbr.rel (%p105) target = $region12
      $region11: #{tpu_custom_call.1} parent=5 // pred_region
        %s109 = ssub.s32 %s17, 1
      $region12: #{tpu_custom_call.1} parent=5 // pred_fallthru
        _
      %p110 = scmp.lt.s32.totalorder %s17, 2
      // Predicated region
      $region13: #{tpu_custom_call.1} parent=5 // pred_check
        %p111 = pneg %p110
      $region14: #{tpu_custom_call.1} parent=5 // pred_check_branch
        %113 = sbr.rel (%p111) target = $region16
      $region15: #{tpu_custom_call.1} parent=5 // pred_region
        // Predicated region
        $region17: #{tpu_custom_call.1} parent=15 // pred_check
          %p114 = pneg %p37
        $region18: #{tpu_custom_call.1} parent=15 // pred_check_branch
          %116 = sbr.rel (%p114) target = $region20
        $region19: #{tpu_custom_call.1} parent=15 // pred_region
          %s117 = sand.u32 %s27, 1
          %s118 = scalar_lea.sflag [#allocation3], %s117
          %s119 = sand.u32 %s27, 1
          %s120 = smul.addr %s119, 16
          %s121 = scalar_lea.vmem [#allocation2], %s120
          %s123 = ssub.s32 256, 256
          %124 = vsyncadd %s118, %s123
          %s125 = smul.addr %s17, 2
          %s126 = smul.addr %s125, 128
          %s127 = scalar_lea.hbm %s0, %s126
          %s128 = sshll.u32 %s121, 4
          %s129 = int_to_ptr.vmem [resolvable:$true] %s128
          %134 = dma.hbm_to_vmem [thread:$0]  %s127, 256, %s129, %s118, 128, 128, 8
        $region20: #{tpu_custom_call.1} parent=15 // pred_fallthru
          _
        // Predicated region
        $region21: #{tpu_custom_call.1} parent=15 // pred_check
          %p135 = pneg %p63
        $region22: #{tpu_custom_call.1} parent=15 // pred_check_branch
          %137 = sbr.rel (%p135) target = $region24
        $region23: #{tpu_custom_call.1} parent=15 // pred_region
          %s138 = sand.u32 %s53, 1
          %s139 = scalar_lea.sflag [#allocation6], %s138
          %s140 = sand.u32 %s53, 1
          %s141 = smul.addr %s140, 16
          %s142 = scalar_lea.vmem [#allocation5], %s141
          %s144 = ssub.s32 256, 256
          %145 = vsyncadd %s139, %s144
          %s146 = smul.addr %s17, 2
          %s147 = smul.addr %s146, 128
          %s148 = scalar_lea.hbm %s1, %s147
          %s149 = sshll.u32 %s142, 4
          %s150 = int_to_ptr.vmem [resolvable:$true] %s149
          %155 = dma.hbm_to_vmem [thread:$0]  %s148, 256, %s150, %s139, 128, 128, 8
        $region24: #{tpu_custom_call.1} parent=15 // pred_fallthru
          _
      $region16: #{tpu_custom_call.1} parent=5 // pred_fallthru
        _
      %p156 = scmp.le.s32.totalorder 1, %s17
      %p157 = scmp.lt.s32.totalorder %s17, 3
      %p158 = pnand %p156, %p157
      %p159 = pneg %p158
      // Predicated region
      $region25: #{tpu_custom_call.1} parent=5 // pred_check
        _
      $region26: #{tpu_custom_call.1} parent=5 // pred_check_branch
        %161 = sbr.rel (%p158) target = $region28
      $region27: #{tpu_custom_call.1} parent=5 // pred_region
        %s162 = ssub.s32 %s17, 1
        %s163 = sand.u32 %s30, 1
        %s164 = scalar_lea.sflag [#allocation3], %s163
        %s165 = sand.u32 %s30, 1
        %s166 = smul.addr %s165, 16
        %s167 = scalar_lea.vmem [#allocation2], %s166
        // Predicated region
        $region29: #{tpu_custom_call.1} parent=27 // pred_check
          %p168 = pneg %p43
        $region30: #{tpu_custom_call.1} parent=27 // pred_check_branch
          %170 = sbr.rel (%p168) target = $region32
        $region31: #{tpu_custom_call.1} parent=27 // pred_region
          %171 = dma.done %s164, 256
        $region32: #{tpu_custom_call.1} parent=27 // pred_fallthru
          _
        %s172 = sand.u32 %s56, 1
        %s173 = scalar_lea.sflag [#allocation6], %s172
        %s174 = sand.u32 %s56, 1
        %s175 = smul.addr %s174, 16
        %s176 = scalar_lea.vmem [#allocation5], %s175
        // Predicated region
        $region33: #{tpu_custom_call.1} parent=27 // pred_check
          %p177 = pneg %p69
        $region34: #{tpu_custom_call.1} parent=27 // pred_check_branch
          %179 = sbr.rel (%p177) target = $region36
        $region35: #{tpu_custom_call.1} parent=27 // pred_region
          %180 = dma.done %s173, 256
        $region36: #{tpu_custom_call.1} parent=27 // pred_fallthru
          _
        %s181 = sand.u32 %s30, 1
        %s182 = scalar_lea.sflag [#allocation3], %s181
        %s183 = sand.u32 %s30, 1
        %s184 = smul.addr %s183, 16
        %s185 = scalar_lea.vmem [#allocation2], %s184
        %p186 = pneg %p43
        %p187 = pneg %p40
        %s188 = sand.u32 %s56, 1
        %s189 = scalar_lea.sflag [#allocation6], %s188
        %s190 = sand.u32 %s56, 1
        %s191 = smul.addr %s190, 16
        %s192 = scalar_lea.vmem [#allocation5], %s191
        %p193 = pneg %p69
        %p194 = pneg %p66
        %p195 = pneg %p95
        %p196 = pneg %p92
        %s197 = sand.u32 %s82, 1
        %s198 = scalar_lea.sflag [#allocation4], %s197
        %s199 = sand.u32 %s82, 1
        %s200 = smul.addr %s199, 4
        %s201 = scalar_lea.vmem [#allocation7], %s200
        %v202 = vld [vmem:[%s167] sm:$0xff]
        %v203 = vld [vmem:[%s167 + $0x8] sm:$0xff]
        %v204 = vld [vmem:[%s176] sm:$0xff]
        %v205 = vld [vmem:[%s176 + $0x8] sm:$0xff]
        %v206 = vadd.f32 %v202, %v203
        %v207 = vrot.slane %v206, 4
        %v208 = vadd.f32 %v206, %v207
        %v209 = vrot.slane %v208, 2
        %v210 = vadd.f32 %v208, %v209
        %v211 = vrot.slane %v210, 1
        %v212 = vadd.f32 %v210, %v211
        %v213 = vrcp.pop 16.0
        %v214 = vmul.f32 %v212, %v213
        %v215 = vadd.f32 %v204, %v205
        %v216 = vrot.slane %v215, 4
        %v217 = vadd.f32 %v215, %v216
        %v218 = vrot.slane %v217, 2
        %v219 = vadd.f32 %v217, %v218
        %v220 = vrot.slane %v219, 1
        %v221 = vadd.f32 %v219, %v220
        %v222 = vmul.f32 %v221, %v213
        %v223 = vsub.f32 %v202, %v214
        %v224 = vsub.f32 %v203, %v214
        %v225 = vmul.f32 %v223, %v223
        %v226 = vmul.f32 %v224, %v224
        %v227 = vadd.f32 %v225, %v226
        %v228 = vrot.slane %v227, 4
        %v229 = vadd.f32 %v227, %v228
        %v230 = vrot.slane %v229, 2
        %v231 = vadd.f32 %v229, %v230
        %v232 = vrot.slane %v231, 1
        %v233 = vadd.f32 %v231, %v232
        %v234 = vrcp.pop 15.0
        %v235 = vmul.f32 %v233, %v234
        %v236 = vrsqrt.pop %v235
        %v237 = vmul.f32 %v235, %v236
        %vm238 = vcmp.eq.f32.partialorder %v235, inf
        %v239 = vsel %vm238, %v235, %v237
        %vm240 = vcmp.eq.f32.partialorder %v235, 0.0
        %v241 = vand.u32 %v235, 2147483648
        %v242 = vsel %vm240, %v241, %v239
        %v243 = vsub.f32 %v204, %v222
        %v244 = vsub.f32 %v205, %v222
        %v245 = vmul.f32 %v243, %v243
        %v246 = vmul.f32 %v244, %v244
        %v247 = vadd.f32 %v245, %v246
        %v248 = vrot.slane %v247, 4
        %v249 = vadd.f32 %v247, %v248
        %v250 = vrot.slane %v249, 2
        %v251 = vadd.f32 %v249, %v250
        %v252 = vrot.slane %v251, 1
        %v253 = vadd.f32 %v251, %v252
        %v254 = vmul.f32 %v253, %v234
        %v255 = vrsqrt.pop %v254
        %v256 = vmul.f32 %v254, %v255
        %vm257 = vcmp.eq.f32.partialorder %v254, inf
        %v258 = vsel %vm257, %v254, %v256
        %vm259 = vcmp.eq.f32.partialorder %v254, 0.0
        %v260 = vand.u32 %v254, 2147483648
        %v261 = vsel %vm259, %v260, %v258
        %vm262 = vcmask 1040384
        %v263 = vsel %vm262, %v214, %v242
        %vm264 = vcmask 1041408
        %v265 = vsel %vm264, %v263, %v222
        %vm266 = vcmask 1042432
        %v267 = vsel %vm266, %v265, %v261
        %268 = vst [vmem:[%s201] sm:$0xf] %v267
        %s269 = sand.u32 %s82, 1
        %s270 = scalar_lea.sflag [#allocation4], %s269
        %s271 = sand.u32 %s82, 1
        %s272 = smul.addr %s271, 4
        %s273 = scalar_lea.vmem [#allocation7], %s272
        // Predicated region
        $region37: #{tpu_custom_call.1} parent=27 // pred_check
          %p274 = pneg %p92
        $region38: #{tpu_custom_call.1} parent=27 // pred_check_branch
          %276 = sbr.rel (%p274) target = $region40
        $region39: #{tpu_custom_call.1} parent=27 // pred_region
          %s278 = ssub.s32 64, 64
          %279 = vsyncadd %s270, %s278
          %s280 = smul.addr %s22, 64
          %s281 = scalar_lea.hbm %s2, %s280
          %s283 = sshll.u32 %s273, 4
          %s284 = int_to_ptr.vmem [resolvable:$true] %s283
          %286 = dma.vmem_to_hbm [thread:$0]  %s284, 64, %s281, %s270
        $region40: #{tpu_custom_call.1} parent=27 // pred_fallthru
          _
      $region28: #{tpu_custom_call.1} parent=5 // pred_fallthru
        _
      %p287 = scmp.le.s32.totalorder 2, %s17
      // Predicated region
      $region41: #{tpu_custom_call.1} parent=5 // pred_check
        %p288 = pneg %p287
      $region42: #{tpu_custom_call.1} parent=5 // pred_check_branch
        %290 = sbr.rel (%p288) target = $region44
      $region43: #{tpu_custom_call.1} parent=5 // pred_region
        %s291 = ssub.s32 %s17, 2
        // Predicated region
        $region45: #{tpu_custom_call.1} parent=43 // pred_check
          %p292 = pneg %p98
        $region46: #{tpu_custom_call.1} parent=43 // pred_check_branch
          %294 = sbr.rel (%p292) target = $region48
        $region47: #{tpu_custom_call.1} parent=43 // pred_region
          %s295 = sand.u32 %s83, 1
          %s296 = scalar_lea.sflag [#allocation4], %s295
          %s297 = sand.u32 %s83, 1
          %s298 = smul.addr %s297, 4
          %s299 = scalar_lea.vmem [#allocation7], %s298
          %300 = dma.done %s296, 64
        $region48: #{tpu_custom_call.1} parent=43 // pred_fallthru
          _
      $region44: #{tpu_custom_call.1} parent=5 // pred_fallthru
        _
    $region6: #{tpu_custom_call.1} parent=1 // loop_footer
      %s21 = sadd.s32 1, %s17
    $region7: #{tpu_custom_call.1} parent=1 // loop_footer_branch
      %16 = sbr.rel target = $region3
    $region8: #{tpu_custom_call.1} parent=1 // loop_exit
      _
    %301 = vsyncpa [#allocation3], 1
    %s302 = scalar_lea.sflag [#allocation3], 1
    %303 = vsyncpa %s302, 1
    %304 = vsyncpa [#allocation6], 1
    %s305 = scalar_lea.sflag [#allocation6], 1
    %306 = vsyncpa %s305, 1
    %307 = vsyncpa [#allocation4], 1
    %s308 = scalar_lea.sflag [#allocation4], 1
    %309 = vsyncpa %s308, 1

</llo_original>
